<compile_context>
chip_gen: v7x
topology: tpu7x:2x2x1
jax: 0.10.0
libtpu: 0.0.40
codegen_flags: <defaults>
</compile_context>

<pallas_src>
import functools

import jax
import jax.numpy as jnp
from jax.experimental import pallas as pl
from jax.experimental.pallas import tpu as pltpu

THETA = 7
DROP_P = 0.1

_TB_MAX = 2048  # batch-tile (lane axis) rows; (feat<=28, 2048) f32 blocks are tiny in VMEM


def _round_up(x, m):
    return (x + m - 1) // m * m


def ae_kernel(x_ref, mask_ref,
              w1_ref, b1_ref,
              w2_ref, b2_ref,
              w3_ref, b3_ref,
              w4_ref, b4_ref,
              out_ref):
    # Activations are (features, batch_tile): batch on the 128-lane axis.
    # Dropout mask is pre-scaled by 1/(1-p), so this is the full dropout op.
    x_missed = x_ref[...] * mask_ref[...]

    # encoder: Linear -> Tanh -> Linear
    h1 = jnp.tanh(
        jnp.dot(w1_ref[...], x_missed, preferred_element_type=jnp.float32)
        + b1_ref[...])
    z = (jnp.dot(w2_ref[...], h1, preferred_element_type=jnp.float32)
         + b2_ref[...])

    # decoder: Linear -> Tanh -> Linear
    h2 = jnp.tanh(
        jnp.dot(w3_ref[...], z, preferred_element_type=jnp.float32)
        + b3_ref[...])
    out = (jnp.dot(w4_ref[...], h2, preferred_element_type=jnp.float32)
           + b4_ref[...])

    out_ref[...] = out.astype(out_ref.dtype)


def init_params(key, column_len):
    """PyTorch-Linear-style init; weights kept in torch-native (out, in) layout."""
    dims = [
        (column_len, column_len + THETA),              # encoder Linear 1
        (column_len + THETA, column_len + 2 * THETA),  # encoder Linear 2
        (column_len + 2 * THETA, column_len + THETA),  # decoder Linear 1
        (column_len + THETA, column_len),              # decoder Linear 2
    ]
    params = []
    for fan_in, fan_out in dims:
        key, kw, kb = jax.random.split(key, 3)
        bound = 1.0 / jnp.sqrt(float(fan_in))
        w = jax.random.uniform(kw, (fan_out, fan_in), jnp.float32,
                               minval=-bound, maxval=bound)
        b = jax.random.uniform(kb, (fan_out, 1), jnp.float32,
                               minval=-bound, maxval=bound)
        params.extend([w, b])
    return params


@functools.partial(jax.jit, static_argnames=("column_len",))
def ae_forward(x, params, dropout_key, *, column_len):
    w1, b1, w2, b2, w3, b3, w4, b4 = params

    # glue: x.view(-1, dim)
    x2d = x.reshape(-1, column_len).astype(jnp.float32)
    batch = x2d.shape[0]

    # Pad batch up to a multiple of the lane tile and put batch on the lane axis.
    b_pad = _round_up(max(batch, 1), 128)
    tb = min(_TB_MAX, b_pad)
    b_pad = _round_up(b_pad, tb)
    x_t = jnp.pad(x2d, ((0, b_pad - batch), (0, 0))).T        # (dim, b_pad)

    # Dropout keep-mask, pre-scaled by 1/(1-p) (inverted dropout, training mode).
    # TODO(synk): mask generated with jax.random in the wrapper; pltpu.prng_* is
    # not available under CPU interpret mode (and torch's RNG stream is not
    # reproduced either way).
    keep = jax.random.bernoulli(dropout_key, p=1.0 - DROP_P,
                                shape=(column_len, b_pad))
    mask = keep.astype(jnp.float32) * (1.0 / (1.0 - DROP_P))

    grid = (b_pad // tb,)
    act_spec = pl.BlockSpec((column_len, tb), lambda i: (0, i))

    def resident(arr):
        return pl.BlockSpec(arr.shape, lambda i: (0, 0))

    out_t = pl.pallas_call(
        ae_kernel,
        out_shape=jax.ShapeDtypeStruct((column_len, b_pad), jnp.float32),
        grid=grid,
        in_specs=[act_spec, act_spec,
                  resident(w1), resident(b1),
                  resident(w2), resident(b2),
                  resident(w3), resident(b3),
                  resident(w4), resident(b4)],
        out_specs=act_spec,
        compiler_params=pltpu.CompilerParams(
            dimension_semantics=("parallel",)),
    )(x_t, mask, w1, b1, w2, b2, w3, b3, w4, b4)

    # glue: back to (batch, dim)
    return out_t.T[:batch]


if __name__ == "__main__":
    column_len = 14      # heart-disease feature columns
    batch = 8

    key = jax.random.PRNGKey(0)
    key, kx, kp, kd = jax.random.split(key, 4)

    x = jax.random.normal(kx, (batch, column_len), dtype=jnp.float32)
    params = init_params(kp, column_len)

    out = ae_forward(x, params, kd, column_len=column_len)
    out = jax.block_until_ready(out)

    assert out.shape == (batch, column_len)
    assert out.dtype == jnp.float32
    print("KERNEL_OK")
</pallas_src>

<mosaic_0001>
module attributes {stable_mosaic.version = 11 : i64} {
  func.func @ae_kernel(%arg0: i32, %arg1: memref<14x128xf32, #tpu.memory_space<vmem>>, %arg2: memref<14x128xf32, #tpu.memory_space<vmem>>, %arg3: memref<21x14xf32, #tpu.memory_space<vmem>>, %arg4: memref<21x1xf32, #tpu.memory_space<vmem>>, %arg5: memref<28x21xf32, #tpu.memory_space<vmem>>, %arg6: memref<28x1xf32, #tpu.memory_space<vmem>>, %arg7: memref<21x28xf32, #tpu.memory_space<vmem>>, %arg8: memref<21x1xf32, #tpu.memory_space<vmem>>, %arg9: memref<14x21xf32, #tpu.memory_space<vmem>>, %arg10: memref<14x1xf32, #tpu.memory_space<vmem>>, %arg11: memref<14x128xf32, #tpu.memory_space<vmem>>) attributes {dimension_semantics = [#tpu.dimension_semantics<parallel>], iteration_bounds = array<i64: 1>, scalar_prefetch = 0 : i64, scratch_operands = 0 : i64, tpu.core_type = #tpu.core_type<tc>, window_params = [{transform_indices = @transform_0, window_bounds = array<i64: 14, 128>}, {transform_indices = @transform_1, window_bounds = array<i64: 14, 128>}, {pipeline_mode = #tpu.pipeline_mode<synchronous>, transform_indices = @transform_2, window_bounds = array<i64: 21, 14>}, {pipeline_mode = #tpu.pipeline_mode<synchronous>, transform_indices = @transform_3, window_bounds = array<i64: 21, 1>}, {pipeline_mode = #tpu.pipeline_mode<synchronous>, transform_indices = @transform_4, window_bounds = array<i64: 28, 21>}, {pipeline_mode = #tpu.pipeline_mode<synchronous>, transform_indices = @transform_5, window_bounds = array<i64: 28, 1>}, {pipeline_mode = #tpu.pipeline_mode<synchronous>, transform_indices = @transform_6, window_bounds = array<i64: 21, 28>}, {pipeline_mode = #tpu.pipeline_mode<synchronous>, transform_indices = @transform_7, window_bounds = array<i64: 21, 1>}, {pipeline_mode = #tpu.pipeline_mode<synchronous>, transform_indices = @transform_8, window_bounds = array<i64: 14, 21>}, {pipeline_mode = #tpu.pipeline_mode<synchronous>, transform_indices = @transform_9, window_bounds = array<i64: 14, 1>}, {transform_indices = @transform_10, window_bounds = array<i64: 14, 128>}]} {
    %c0 = arith.constant 0 : index
    %c0_0 = arith.constant 0 : index
    %0 = vector.load %arg1[%c0, %c0_0] : memref<14x128xf32, #tpu.memory_space<vmem>>, vector<14x128xf32>
    %c0_1 = arith.constant 0 : index
    %c0_2 = arith.constant 0 : index
    %1 = vector.load %arg2[%c0_1, %c0_2] : memref<14x128xf32, #tpu.memory_space<vmem>>, vector<14x128xf32>
    %2 = arith.mulf %0, %1 : vector<14x128xf32>
    %c0_3 = arith.constant 0 : index
    %c0_4 = arith.constant 0 : index
    %3 = vector.load %arg3[%c0_3, %c0_4] : memref<21x14xf32, #tpu.memory_space<vmem>>, vector<21x14xf32>
    %cst = arith.constant dense<0.000000e+00> : vector<21x128xf32>
    %4 = tpu.matmul %3, %2, %cst {dimension_numbers = #tpu.dot_dimension_numbers<[1], [0], [0], [1], [0, 0, 1, 1], [], []>} : vector<21x14xf32>, vector<14x128xf32>, vector<21x128xf32> -> vector<21x128xf32>
    %c0_5 = arith.constant 0 : index
    %c0_6 = arith.constant 0 : index
    %5 = vector.load %arg4[%c0_5, %c0_6] : memref<21x1xf32, #tpu.memory_space<vmem>>, vector<21x1xf32>
    %6 = vector.broadcast %5 : vector<21x1xf32> to vector<21x128xf32>
    %7 = arith.addf %4, %6 : vector<21x128xf32>
    %8 = math.tanh %7 : vector<21x128xf32>
    %c0_7 = arith.constant 0 : index
    %c0_8 = arith.constant 0 : index
    %9 = vector.load %arg5[%c0_7, %c0_8] : memref<28x21xf32, #tpu.memory_space<vmem>>, vector<28x21xf32>
    %cst_9 = arith.constant dense<0.000000e+00> : vector<28x128xf32>
    %10 = tpu.matmul %9, %8, %cst_9 {dimension_numbers = #tpu.dot_dimension_numbers<[1], [0], [0], [1], [0, 0, 1, 1], [], []>} : vector<28x21xf32>, vector<21x128xf32>, vector<28x128xf32> -> vector<28x128xf32>
    %c0_10 = arith.constant 0 : index
    %c0_11 = arith.constant 0 : index
    %11 = vector.load %arg6[%c0_10, %c0_11] : memref<28x1xf32, #tpu.memory_space<vmem>>, vector<28x1xf32>
    %12 = vector.broadcast %11 : vector<28x1xf32> to vector<28x128xf32>
    %13 = arith.addf %10, %12 : vector<28x128xf32>
    %c0_12 = arith.constant 0 : index
    %c0_13 = arith.constant 0 : index
    %14 = vector.load %arg7[%c0_12, %c0_13] : memref<21x28xf32, #tpu.memory_space<vmem>>, vector<21x28xf32>
    %cst_14 = arith.constant dense<0.000000e+00> : vector<21x128xf32>
    %15 = tpu.matmul %14, %13, %cst_14 {dimension_numbers = #tpu.dot_dimension_numbers<[1], [0], [0], [1], [0, 0, 1, 1], [], []>} : vector<21x28xf32>, vector<28x128xf32>, vector<21x128xf32> -> vector<21x128xf32>
    %c0_15 = arith.constant 0 : index
    %c0_16 = arith.constant 0 : index
    %16 = vector.load %arg8[%c0_15, %c0_16] : memref<21x1xf32, #tpu.memory_space<vmem>>, vector<21x1xf32>
    %17 = vector.broadcast %16 : vector<21x1xf32> to vector<21x128xf32>
    %18 = arith.addf %15, %17 : vector<21x128xf32>
    %19 = math.tanh %18 : vector<21x128xf32>
    %c0_17 = arith.constant 0 : index
    %c0_18 = arith.constant 0 : index
    %20 = vector.load %arg9[%c0_17, %c0_18] : memref<14x21xf32, #tpu.memory_space<vmem>>, vector<14x21xf32>
    %cst_19 = arith.constant dense<0.000000e+00> : vector<14x128xf32>
    %21 = tpu.matmul %20, %19, %cst_19 {dimension_numbers = #tpu.dot_dimension_numbers<[1], [0], [0], [1], [0, 0, 1, 1], [], []>} : vector<14x21xf32>, vector<21x128xf32>, vector<14x128xf32> -> vector<14x128xf32>
    %c0_20 = arith.constant 0 : index
    %c0_21 = arith.constant 0 : index
    %22 = vector.load %arg10[%c0_20, %c0_21] : memref<14x1xf32, #tpu.memory_space<vmem>>, vector<14x1xf32>
    %23 = vector.broadcast %22 : vector<14x1xf32> to vector<14x128xf32>
    %24 = arith.addf %21, %23 : vector<14x128xf32>
    %c0_22 = arith.constant 0 : index
    %c0_23 = arith.constant 0 : index
    %25 = vector.load %arg11[%c0_22, %c0_23] : memref<14x128xf32, #tpu.memory_space<vmem>>, vector<14x128xf32>
    tpu.vector_store %arg11[%c0_22, %c0_23], %24 {strides = array<i32>} : memref<14x128xf32, #tpu.memory_space<vmem>>, vector<14x128xf32>,
    return
  }
  func.func @transform_0(%arg0: i32) -> (i32, i32) {
    %c0_i32 = arith.constant 0 : i32
    %c0_i32_0 = arith.constant 0 : i32
    return %c0_i32, %arg0 : i32, i32
  }
  func.func @transform_1(%arg0: i32) -> (i32, i32) {
    %c0_i32 = arith.constant 0 : i32
    %c0_i32_0 = arith.constant 0 : i32
    return %c0_i32, %arg0 : i32, i32
  }
  func.func @transform_2(%arg0: i32) -> (i32, i32) {
    %c0_i32 = arith.constant 0 : i32
    %c0_i32_0 = arith.constant 0 : i32
    %c0_i32_1 = arith.constant 0 : i32
    return %c0_i32, %c0_i32_0 : i32, i32
  }
  func.func @transform_3(%arg0: i32) -> (i32, i32) {
    %c0_i32 = arith.constant 0 : i32
    %c0_i32_0 = arith.constant 0 : i32
    %c0_i32_1 = arith.constant 0 : i32
    return %c0_i32, %c0_i32_0 : i32, i32
  }
  func.func @transform_4(%arg0: i32) -> (i32, i32) {
    %c0_i32 = arith.constant 0 : i32
    %c0_i32_0 = arith.constant 0 : i32
    %c0_i32_1 = arith.constant 0 : i32
    return %c0_i32, %c0_i32_0 : i32, i32
  }
  func.func @transform_5(%arg0: i32) -> (i32, i32) {
    %c0_i32 = arith.constant 0 : i32
    %c0_i32_0 = arith.constant 0 : i32
    %c0_i32_1 = arith.constant 0 : i32
    return %c0_i32, %c0_i32_0 : i32, i32
  }
  func.func @transform_6(%arg0: i32) -> (i32, i32) {
    %c0_i32 = arith.constant 0 : i32
    %c0_i32_0 = arith.constant 0 : i32
    %c0_i32_1 = arith.constant 0 : i32
    return %c0_i32, %c0_i32_0 : i32, i32
  }
  func.func @transform_7(%arg0: i32) -> (i32, i32) {
    %c0_i32 = arith.constant 0 : i32
    %c0_i32_0 = arith.constant 0 : i32
    %c0_i32_1 = arith.constant 0 : i32
    return %c0_i32, %c0_i32_0 : i32, i32
  }
  func.func @transform_8(%arg0: i32) -> (i32, i32) {
    %c0_i32 = arith.constant 0 : i32
    %c0_i32_0 = arith.constant 0 : i32
    %c0_i32_1 = arith.constant 0 : i32
    return %c0_i32, %c0_i32_0 : i32, i32
  }
  func.func @transform_9(%arg0: i32) -> (i32, i32) {
    %c0_i32 = arith.constant 0 : i32
    %c0_i32_0 = arith.constant 0 : i32
    %c0_i32_1 = arith.constant 0 : i32
    return %c0_i32, %c0_i32_0 : i32, i32
  }
  func.func @transform_10(%arg0: i32) -> (i32, i32) {
    %c0_i32 = arith.constant 0 : i32
    %c0_i32_0 = arith.constant 0 : i32
    return %c0_i32, %arg0 : i32, i32
  }
}

</mosaic_0001>

<llo_original>
// kernel: ae_forward.1
$region0: #{ae_forward.1}
  #allocation0 [shape = 'u32[]', space=smem, size = 0x4, offset = 0x4, fixed_abs, tag = 'smem constant byte address 0x4 - core index']
  #allocation1 [shape = 'u32[144,128]{1,0:T(1,128)}', space=vmem, size = 0x12000, scoped, tag = 'internal scratch']
  %s0 = inlined_call_operand.vmem [shape: f32[14,128], index: 0, kind: input, shape index: {}]
  %s1 = inlined_call_operand.vmem [shape: f32[14,128], index: 1, kind: input, shape index: {}]
  %s2 = inlined_call_operand.vmem [shape: f32[21,14], index: 2, kind: input, shape index: {}]
  %s3 = inlined_call_operand.vmem [shape: f32[21,1], index: 3, kind: input, shape index: {}]
  %s4 = inlined_call_operand.vmem [shape: f32[28,21], index: 4, kind: input, shape index: {}]
  %s5 = inlined_call_operand.vmem [shape: f32[28,1], index: 5, kind: input, shape index: {}]
  %s6 = inlined_call_operand.vmem [shape: f32[21,28], index: 6, kind: input, shape index: {}]
  %s7 = inlined_call_operand.vmem [shape: f32[21,1], index: 7, kind: input, shape index: {}]
  %s8 = inlined_call_operand.vmem [shape: f32[14,21], index: 8, kind: input, shape index: {}]
  %s9 = inlined_call_operand.vmem [shape: f32[14,1], index: 9, kind: input, shape index: {}]
  %s10 = inlined_call_operand.vmem [shape: f32[14,128], index: 10, kind: output, shape index: {}]
  %s11 = sld [smem:[#allocation0]]
  $region50: #{ae_forward.1} parent=0
    _
  %s13 = ssub.s32 1, %s11
  %s14 = scalar_select 0, %s13, %s11
  // Predicated region
  $region2: #{ae_forward.1} parent=0 // pred_check
    _
  $region3: #{ae_forward.1} parent=0 // pred_check_branch
    %16 = sbr.rel (0) target = $region5
  $region4: #{ae_forward.1} parent=0 // pred_region
    _
  $region5: #{ae_forward.1} parent=0 // pred_fallthru
    _
  // Predicated region
  $region6: #{ae_forward.1} parent=0 // pred_check
    _
  $region7: #{ae_forward.1} parent=0 // pred_check_branch
    %18 = sbr.rel (0) target = $region9
  $region8: #{ae_forward.1} parent=0 // pred_region
    _
  $region9: #{ae_forward.1} parent=0 // pred_fallthru
    _
  // Predicated region
  $region10: #{ae_forward.1} parent=0 // pred_check
    _
  $region11: #{ae_forward.1} parent=0 // pred_check_branch
    %20 = sbr.rel (0) target = $region13
  $region12: #{ae_forward.1} parent=0 // pred_region
    _
  $region13: #{ae_forward.1} parent=0 // pred_fallthru
    _
  // Predicated region
  $region14: #{ae_forward.1} parent=0 // pred_check
    _
  $region15: #{ae_forward.1} parent=0 // pred_check_branch
    %22 = sbr.rel (0) target = $region17
  $region16: #{ae_forward.1} parent=0 // pred_region
    _
  $region17: #{ae_forward.1} parent=0 // pred_fallthru
    _
  // Predicated region
  $region18: #{ae_forward.1} parent=0 // pred_check
    _
  $region19: #{ae_forward.1} parent=0 // pred_check_branch
    %24 = sbr.rel (0) target = $region21
  $region20: #{ae_forward.1} parent=0 // pred_region
    _
  $region21: #{ae_forward.1} parent=0 // pred_fallthru
    _
  // Predicated region
  $region22: #{ae_forward.1} parent=0 // pred_check
    _
  $region23: #{ae_forward.1} parent=0 // pred_check_branch
    %26 = sbr.rel (0) target = $region25
  $region24: #{ae_forward.1} parent=0 // pred_region
    _
  $region25: #{ae_forward.1} parent=0 // pred_fallthru
    _
  // Predicated region
  $region26: #{ae_forward.1} parent=0 // pred_check
    _
  $region27: #{ae_forward.1} parent=0 // pred_check_branch
    %28 = sbr.rel (0) target = $region29
  $region28: #{ae_forward.1} parent=0 // pred_region
    _
  $region29: #{ae_forward.1} parent=0 // pred_fallthru
    _
  // Predicated region
  $region30: #{ae_forward.1} parent=0 // pred_check
    _
  $region31: #{ae_forward.1} parent=0 // pred_check_branch
    %30 = sbr.rel (0) target = $region33
  $region32: #{ae_forward.1} parent=0 // pred_region
    _
  $region33: #{ae_forward.1} parent=0 // pred_fallthru
    _
  // Predicated region
  $region34: #{ae_forward.1} parent=0 // pred_check
    _
  $region35: #{ae_forward.1} parent=0 // pred_check_branch
    %32 = sbr.rel (0) target = $region37
  $region36: #{ae_forward.1} parent=0 // pred_region
    _
  $region37: #{ae_forward.1} parent=0 // pred_fallthru
    _
  // Predicated region
  $region38: #{ae_forward.1} parent=0 // pred_check
    _
  $region39: #{ae_forward.1} parent=0 // pred_check_branch
    %34 = sbr.rel (0) target = $region41
  $region40: #{ae_forward.1} parent=0 // pred_region
    _
  $region41: #{ae_forward.1} parent=0 // pred_fallthru
    _
  %v35 = vld [vmem:[%s0] sm:$0xff]
  %v36 = vld [vmem:[%s0 + $0x8] sm:$0x3f]
  %v37 = vld [vmem:[%s1] sm:$0xff]
  %v38 = vld [vmem:[%s1 + $0x8] sm:$0x3f]
  %v39 = vmul.f32 %v35, %v37
  %v40 = vmul.f32 %v36, %v38
  %v41 = vld [vmem:[%s2] sm:$0xff]
  %v42 = vld [vmem:[%s2 + $0x8] sm:$0xff]
  %v43 = vld [vmem:[%s2 + $0x10] sm:$0x1f]
  %v44 = vld [vmem:[%s3] sm:$0xff]
  %v45 = vld [vmem:[%s3 + $0x8] sm:$0xff]
  %v46 = vld [vmem:[%s3 + $0x10] sm:$0x1f]
  %48 = vset.pattern.permute.xlu0 0
  %49 = vperm.xlu0 %48, %v44
  %v50 = vpop.permute.xlu0 %49
  %53 = vset.pattern.permute.xlu0 0
  %54 = vperm.xlu0 %53, %v45
  %v55 = vpop.permute.xlu0 %54
  %58 = vset.pattern.permute.xlu0 0
  %59 = vperm.xlu0 %58, %v46
  %v60 = vpop.permute.xlu0 %59
  %vm62 = vcmask 113664
  %v64 = vsel %vm62, %v41, 0
  %v67 = vsel %vm62, %v42, 0
  %v70 = vsel %vm62, %v43, 0
  %vm72 = vcmask 1045504
  %v74 = vsel %vm72, %v40, 0
  %76 = vmatprep.subr.mxu0 0.0
  %77 = vmatpush1.msra.mxu0 %v39
  %78 = vmatprep.subr.mxu0 0.0
  %79 = vmatpush1.msra.mxu0 %v74
  %80 = vmatprep.subr.mxu0 0.0
  %81 = vmatpush1.msra.mxu0 0.0
  %82 = vmatprep.subr.mxu0 0.0
  %83 = vmatpush1.msra.mxu0 0.0
  %84 = vmatprep.subr.mxu0 0.0
  %85 = vmatpush1.msra.mxu0 0.0
  %86 = vmatprep.subr.mxu0 0.0
  %87 = vmatpush1.msra.mxu0 0.0
  %88 = vmatprep.subr.mxu0 0.0
  %89 = vmatpush1.msra.mxu0 0.0
  %90 = vmatprep.subr.mxu0 0.0
  %91 = vmatpush1.msra.mxu0 0.0
  %92 = vmatprep.subr.mxu0 0.0
  %93 = vmatpush1.msra.mxu0 0.0
  %94 = vmatprep.subr.mxu0 0.0
  %95 = vmatpush1.msra.mxu0 0.0
  %96 = vmatprep.subr.mxu0 0.0
  %97 = vmatpush1.msra.mxu0 0.0
  %98 = vmatprep.subr.mxu0 0.0
  %99 = vmatpush1.msra.mxu0 0.0
  %100 = vmatprep.subr.mxu0 0.0
  %101 = vmatpush1.msra.mxu0 0.0
  %102 = vmatprep.subr.mxu0 0.0
  %103 = vmatpush1.msra.mxu0 0.0
  %104 = vmatprep.subr.mxu0 0.0
  %105 = vmatpush1.msra.mxu0 0.0
  %106 = vmatprep.subr.mxu0 0.0
  %107 = vmatpush1.msra.mxu0 0.0
  %108 = vmatprep.subr.mxu0 0.0
  %109 = vmatpush1.msra.mxu0 0.0
  %110 = vmatprep.subr.mxu0 0.0
  %111 = vmatpush1.msra.mxu0 0.0
  %112 = vmatprep.subr.mxu0 0.0
  %113 = vmatpush1.msra.mxu0 0.0
  %114 = vmatprep.subr.mxu0 0.0
  %115 = vmatpush1.msra.mxu0 0.0
  %116 = vmatprep.subr.mxu0 0.0
  %117 = vmatpush1.msra.mxu0 0.0
  %118 = vmatprep.subr.mxu0 0.0
  %119 = vmatpush1.msra.mxu0 0.0
  %120 = vmatprep.subr.mxu0 0.0
  %121 = vmatpush1.msra.mxu0 0.0
  %122 = vmatprep.subr.mxu0 0.0
  %123 = vmatpush1.msra.mxu0 0.0
  %124 = vmatprep.subr.mxu0 0.0
  %125 = vmatpush1.msra.mxu0 0.0
  %126 = vmatprep.subr.mxu0 0.0
  %127 = vmatpush1.msra.mxu0 0.0
  %128 = vmatprep.subr.mxu0 0.0
  %129 = vmatpush1.msra.mxu0 0.0
  %130 = vmatprep.subr.mxu0 0.0
  %131 = vmatpush1.msra.mxu0 0.0
  %132 = vmatprep.subr.mxu0 0.0
  %133 = vmatpush1.msra.mxu0 0.0
  %134 = vmatprep.subr.mxu0 0.0
  %135 = vmatpush1.msra.mxu0 0.0
  %136 = vmatprep.subr.mxu0 0.0
  %137 = vmatpush1.msra.mxu0 0.0
  %138 = vmatprep.subr.mxu0 0.0
  %139 = vmatpush1.msra.mxu0 0.0
  %140 = vmatprep.mubr.f32.mxu0 0.0
  %141 = vmatmul.mubr.f32.gmra.mrb[0].mxu0 %v64
  %v142 = vpop.f32.mrb[0].mxu0
  %v143 = vadd.f32 %v50, %v142
  %v144 = vpop.f32.mrb[0].mxu0
  %145 = vmatprep.mubr.f32.mxu0 0.0
  %146 = vmatmul.mubr.f32.gmra.mrb[0].mxu0 %v67
  %v147 = vpop.f32.mrb[0].mxu0
  %v148 = vadd.f32 %v55, %v147
  %v149 = vpop.f32.mrb[0].mxu0
  %150 = vmatprep.mubr.f32.mxu0 0.0
  %151 = vmatmul.mubr.f32.gmra.mrb[0].mxu0 %v70
  %v152 = vpop.f32.mrb[0].mxu0
  %v153 = vadd.f32 %v60, %v152
  %v154 = vpop.f32.mrb[0].mxu0
  %155 = vdwg.mxu0
  %v156 = vtanh.pop %v143
  %v157 = vtanh.pop %v148
  %v158 = vtanh.pop %v153
  %v159 = vld [vmem:[%s4] sm:$0xff]
  %v160 = vld [vmem:[%s4 + $0x8] sm:$0xff]
  %v161 = vld [vmem:[%s4 + $0x10] sm:$0xff]
  %v162 = vld [vmem:[%s4 + $0x18] sm:$0xf]
  %v163 = vld [vmem:[%s5] sm:$0xff]
  %v164 = vld [vmem:[%s5 + $0x8] sm:$0xff]
  %v165 = vld [vmem:[%s5 + $0x10] sm:$0xff]
  %v166 = vld [vmem:[%s5 + $0x18] sm:$0xf]
  %168 = vset.pattern.permute.xlu0 0
  %169 = vperm.xlu0 %168, %v163
  %v170 = vpop.permute.xlu0 %169
  %173 = vset.pattern.permute.xlu0 0
  %174 = vperm.xlu0 %173, %v164
  %v175 = vpop.permute.xlu0 %174
  %178 = vset.pattern.permute.xlu0 0
  %179 = vperm.xlu0 %178, %v165
  %v180 = vpop.permute.xlu0 %179
  %183 = vset.pattern.permute.xlu0 0
  %184 = vperm.xlu0 %183, %v166
  %v185 = vpop.permute.xlu0 %184
  %vm187 = vcmask 171008
  %v189 = vsel %vm187, %v159, 0
  %v192 = vsel %vm187, %v160, 0
  %v195 = vsel %vm187, %v161, 0
  %v198 = vsel %vm187, %v162, 0
  %vm200 = vcmask 1044480
  %v202 = vsel %vm200, %v158, 0
  %204 = vmatprep.subr.mxu0 0.0
  %205 = vmatpush1.msra.mxu0 %v156
  %206 = vmatprep.subr.mxu0 0.0
  %207 = vmatpush1.msra.mxu0 %v157
  %208 = vmatprep.subr.mxu0 0.0
  %209 = vmatpush1.msra.mxu0 %v202
  %210 = vmatprep.subr.mxu0 0.0
  %211 = vmatpush1.msra.mxu0 0.0
  %212 = vmatprep.subr.mxu0 0.0
  %213 = vmatpush1.msra.mxu0 0.0
  %214 = vmatprep.subr.mxu0 0.0
  %215 = vmatpush1.msra.mxu0 0.0
  %216 = vmatprep.subr.mxu0 0.0
  %217 = vmatpush1.msra.mxu0 0.0
  %218 = vmatprep.subr.mxu0 0.0
  %219 = vmatpush1.msra.mxu0 0.0
  %220 = vmatprep.subr.mxu0 0.0
  %221 = vmatpush1.msra.mxu0 0.0
  %222 = vmatprep.subr.mxu0 0.0
  %223 = vmatpush1.msra.mxu0 0.0
  %224 = vmatprep.subr.mxu0 0.0
  %225 = vmatpush1.msra.mxu0 0.0
  %226 = vmatprep.subr.mxu0 0.0
  %227 = vmatpush1.msra.mxu0 0.0
  %228 = vmatprep.subr.mxu0 0.0
  %229 = vmatpush1.msra.mxu0 0.0
  %230 = vmatprep.subr.mxu0 0.0
  %231 = vmatpush1.msra.mxu0 0.0
  %232 = vmatprep.subr.mxu0 0.0
  %233 = vmatpush1.msra.mxu0 0.0
  %234 = vmatprep.subr.mxu0 0.0
  %235 = vmatpush1.msra.mxu0 0.0
  %236 = vmatprep.subr.mxu0 0.0
  %237 = vmatpush1.msra.mxu0 0.0
  %238 = vmatprep.subr.mxu0 0.0
  %239 = vmatpush1.msra.mxu0 0.0
  %240 = vmatprep.subr.mxu0 0.0
  %241 = vmatpush1.msra.mxu0 0.0
  %242 = vmatprep.subr.mxu0 0.0
  %243 = vmatpush1.msra.mxu0 0.0
  %244 = vmatprep.subr.mxu0 0.0
  %245 = vmatpush1.msra.mxu0 0.0
  %246 = vmatprep.subr.mxu0 0.0
  %247 = vmatpush1.msra.mxu0 0.0
  %248 = vmatprep.subr.mxu0 0.0
  %249 = vmatpush1.msra.mxu0 0.0
  %250 = vmatprep.subr.mxu0 0.0
  %251 = vmatpush1.msra.mxu0 0.0
  %252 = vmatprep.subr.mxu0 0.0
  %253 = vmatpush1.msra.mxu0 0.0
  %254 = vmatprep.subr.mxu0 0.0
  %255 = vmatpush1.msra.mxu0 0.0
  %256 = vmatprep.subr.mxu0 0.0
  %257 = vmatpush1.msra.mxu0 0.0
  %258 = vmatprep.subr.mxu0 0.0
  %259 = vmatpush1.msra.mxu0 0.0
  %260 = vmatprep.subr.mxu0 0.0
  %261 = vmatpush1.msra.mxu0 0.0
  %262 = vmatprep.subr.mxu0 0.0
  %263 = vmatpush1.msra.mxu0 0.0
  %264 = vmatprep.subr.mxu0 0.0
  %265 = vmatpush1.msra.mxu0 0.0
  %266 = vmatprep.subr.mxu0 0.0
  %267 = vmatpush1.msra.mxu0 0.0
  %268 = vmatprep.mubr.f32.mxu0 0.0
  %269 = vmatmul.mubr.f32.gmra.mrb[0].mxu0 %v189
  %v270 = vpop.f32.mrb[0].mxu0
  %v271 = vadd.f32 %v170, %v270
  %v272 = vpop.f32.mrb[0].mxu0
  %273 = vmatprep.mubr.f32.mxu0 0.0
  %274 = vmatmul.mubr.f32.gmra.mrb[0].mxu0 %v192
  %v275 = vpop.f32.mrb[0].mxu0
  %v276 = vadd.f32 %v175, %v275
  %v277 = vpop.f32.mrb[0].mxu0
  %278 = vmatprep.mubr.f32.mxu0 0.0
  %279 = vmatmul.mubr.f32.gmra.mrb[0].mxu0 %v195
  %v280 = vpop.f32.mrb[0].mxu0
  %v281 = vadd.f32 %v180, %v280
  %v282 = vpop.f32.mrb[0].mxu0
  %283 = vmatprep.mubr.f32.mxu0 0.0
  %284 = vmatmul.mubr.f32.gmra.mrb[0].mxu0 %v198
  %v285 = vpop.f32.mrb[0].mxu0
  %v286 = vadd.f32 %v185, %v285
  %v287 = vpop.f32.mrb[0].mxu0
  %288 = vdwg.mxu0
  %v289 = vld [vmem:[%s6] sm:$0xff]
  %v290 = vld [vmem:[%s6 + $0x8] sm:$0xff]
  %v291 = vld [vmem:[%s6 + $0x10] sm:$0x1f]
  %v292 = vld [vmem:[%s7] sm:$0xff]
  %v293 = vld [vmem:[%s7 + $0x8] sm:$0xff]
  %v294 = vld [vmem:[%s7 + $0x10] sm:$0x1f]
  %296 = vset.pattern.permute.xlu0 0
  %297 = vperm.xlu0 %296, %v292
  %v298 = vpop.permute.xlu0 %297
  %301 = vset.pattern.permute.xlu0 0
  %302 = vperm.xlu0 %301, %v293
  %v303 = vpop.permute.xlu0 %302
  %306 = vset.pattern.permute.xlu0 0
  %307 = vperm.xlu0 %306, %v294
  %v308 = vpop.permute.xlu0 %307
  %vm310 = vcmask 228352
  %v312 = vsel %vm310, %v289, 0
  %v315 = vsel %vm310, %v290, 0
  %v318 = vsel %vm310, %v291, 0
  %vm320 = vcmask 1043456
  %v322 = vsel %vm320, %v286, 0
  %324 = vmatprep.subr.mxu0 0.0
  %325 = vmatpush1.msra.mxu0 %v271
  %326 = vmatprep.subr.mxu0 0.0
  %327 = vmatpush1.msra.mxu0 %v276
  %328 = vmatprep.subr.mxu0 0.0
  %329 = vmatpush1.msra.mxu0 %v281
  %330 = vmatprep.subr.mxu0 0.0
  %331 = vmatpush1.msra.mxu0 %v322
  %332 = vmatprep.subr.mxu0 0.0
  %333 = vmatpush1.msra.mxu0 0.0
  %334 = vmatprep.subr.mxu0 0.0
  %335 = vmatpush1.msra.mxu0 0.0
  %336 = vmatprep.subr.mxu0 0.0
  %337 = vmatpush1.msra.mxu0 0.0
  %338 = vmatprep.subr.mxu0 0.0
  %339 = vmatpush1.msra.mxu0 0.0
  %340 = vmatprep.subr.mxu0 0.0
  %341 = vmatpush1.msra.mxu0 0.0
  %342 = vmatprep.subr.mxu0 0.0
  %343 = vmatpush1.msra.mxu0 0.0
  %344 = vmatprep.subr.mxu0 0.0
  %345 = vmatpush1.msra.mxu0 0.0
  %346 = vmatprep.subr.mxu0 0.0
  %347 = vmatpush1.msra.mxu0 0.0
  %348 = vmatprep.subr.mxu0 0.0
  %349 = vmatpush1.msra.mxu0 0.0
  %350 = vmatprep.subr.mxu0 0.0
  %351 = vmatpush1.msra.mxu0 0.0
  %352 = vmatprep.subr.mxu0 0.0
  %353 = vmatpush1.msra.mxu0 0.0
  %354 = vmatprep.subr.mxu0 0.0
  %355 = vmatpush1.msra.mxu0 0.0
  %356 = vmatprep.subr.mxu0 0.0
  %357 = vmatpush1.msra.mxu0 0.0
  %358 = vmatprep.subr.mxu0 0.0
  %359 = vmatpush1.msra.mxu0 0.0
  %360 = vmatprep.subr.mxu0 0.0
  %361 = vmatpush1.msra.mxu0 0.0
  %362 = vmatprep.subr.mxu0 0.0
  %363 = vmatpush1.msra.mxu0 0.0
  %364 = vmatprep.subr.mxu0 0.0
  %365 = vmatpush1.msra.mxu0 0.0
  %366 = vmatprep.subr.mxu0 0.0
  %367 = vmatpush1.msra.mxu0 0.0
  %368 = vmatprep.subr.mxu0 0.0
  %369 = vmatpush1.msra.mxu0 0.0
  %370 = vmatprep.subr.mxu0 0.0
  %371 = vmatpush1.msra.mxu0 0.0
  %372 = vmatprep.subr.mxu0 0.0
  %373 = vmatpush1.msra.mxu0 0.0
  %374 = vmatprep.subr.mxu0 0.0
  %375 = vmatpush1.msra.mxu0 0.0
  %376 = vmatprep.subr.mxu0 0.0
  %377 = vmatpush1.msra.mxu0 0.0
  %378 = vmatprep.subr.mxu0 0.0
  %379 = vmatpush1.msra.mxu0 0.0
  %380 = vmatprep.subr.mxu0 0.0
  %381 = vmatpush1.msra.mxu0 0.0
  %382 = vmatprep.subr.mxu0 0.0
  %383 = vmatpush1.msra.mxu0 0.0
  %384 = vmatprep.subr.mxu0 0.0
  %385 = vmatpush1.msra.mxu0 0.0
  %386 = vmatprep.subr.mxu0 0.0
  %387 = vmatpush1.msra.mxu0 0.0
  %388 = vmatprep.mubr.f32.mxu0 0.0
  %389 = vmatmul.mubr.f32.gmra.mrb[0].mxu0 %v312
  %v390 = vpop.f32.mrb[0].mxu0
  %v391 = vadd.f32 %v298, %v390
  %v392 = vpop.f32.mrb[0].mxu0
  %393 = vmatprep.mubr.f32.mxu0 0.0
  %394 = vmatmul.mubr.f32.gmra.mrb[0].mxu0 %v315
  %v395 = vpop.f32.mrb[0].mxu0
  %v396 = vadd.f32 %v303, %v395
  %v397 = vpop.f32.mrb[0].mxu0
  %398 = vmatprep.mubr.f32.mxu0 0.0
  %399 = vmatmul.mubr.f32.gmra.mrb[0].mxu0 %v318
  %v400 = vpop.f32.mrb[0].mxu0
  %v401 = vadd.f32 %v308, %v400
  %v402 = vpop.f32.mrb[0].mxu0
  %403 = vdwg.mxu0
  %v404 = vtanh.pop %v391
  %v405 = vtanh.pop %v396
  %v406 = vtanh.pop %v401
  %v407 = vld [vmem:[%s8] sm:$0xff]
  %v408 = vld [vmem:[%s8 + $0x8] sm:$0x3f]
  %v409 = vld [vmem:[%s9] sm:$0xff]
  %v410 = vld [vmem:[%s9 + $0x8] sm:$0x3f]
  %412 = vset.pattern.permute.xlu0 0
  %413 = vperm.xlu0 %412, %v409
  %v414 = vpop.permute.xlu0 %413
  %417 = vset.pattern.permute.xlu0 0
  %418 = vperm.xlu0 %417, %v410
  %v419 = vpop.permute.xlu0 %418
  %v422 = vsel %vm187, %v407, 0
  %v425 = vsel %vm187, %v408, 0
  %v428 = vsel %vm200, %v406, 0
  %430 = vmatprep.subr.mxu0 0.0
  %431 = vmatpush1.msra.mxu0 %v404
  %432 = vmatprep.subr.mxu0 0.0
  %433 = vmatpush1.msra.mxu0 %v405
  %434 = vmatprep.subr.mxu0 0.0
  %435 = vmatpush1.msra.mxu0 %v428
  %436 = vmatprep.subr.mxu0 0.0
  %437 = vmatpush1.msra.mxu0 0.0
  %438 = vmatprep.subr.mxu0 0.0
  %439 = vmatpush1.msra.mxu0 0.0
  %440 = vmatprep.subr.mxu0 0.0
  %441 = vmatpush1.msra.mxu0 0.0
  %442 = vmatprep.subr.mxu0 0.0
  %443 = vmatpush1.msra.mxu0 0.0
  %444 = vmatprep.subr.mxu0 0.0
  %445 = vmatpush1.msra.mxu0 0.0
  %446 = vmatprep.subr.mxu0 0.0
  %447 = vmatpush1.msra.mxu0 0.0
  %448 = vmatprep.subr.mxu0 0.0
  %449 = vmatpush1.msra.mxu0 0.0
  %450 = vmatprep.subr.mxu0 0.0
  %451 = vmatpush1.msra.mxu0 0.0
  %452 = vmatprep.subr.mxu0 0.0
  %453 = vmatpush1.msra.mxu0 0.0
  %454 = vmatprep.subr.mxu0 0.0
  %455 = vmatpush1.msra.mxu0 0.0
  %456 = vmatprep.subr.mxu0 0.0
  %457 = vmatpush1.msra.mxu0 0.0
  %458 = vmatprep.subr.mxu0 0.0
  %459 = vmatpush1.msra.mxu0 0.0
  %460 = vmatprep.subr.mxu0 0.0
  %461 = vmatpush1.msra.mxu0 0.0
  %462 = vmatprep.subr.mxu0 0.0
  %463 = vmatpush1.msra.mxu0 0.0
  %464 = vmatprep.subr.mxu0 0.0
  %465 = vmatpush1.msra.mxu0 0.0
  %466 = vmatprep.subr.mxu0 0.0
  %467 = vmatpush1.msra.mxu0 0.0
  %468 = vmatprep.subr.mxu0 0.0
  %469 = vmatpush1.msra.mxu0 0.0
  %470 = vmatprep.subr.mxu0 0.0
  %471 = vmatpush1.msra.mxu0 0.0
  %472 = vmatprep.subr.mxu0 0.0
  %473 = vmatpush1.msra.mxu0 0.0
  %474 = vmatprep.subr.mxu0 0.0
  %475 = vmatpush1.msra.mxu0 0.0
  %476 = vmatprep.subr.mxu0 0.0
  %477 = vmatpush1.msra.mxu0 0.0
  %478 = vmatprep.subr.mxu0 0.0
  %479 = vmatpush1.msra.mxu0 0.0
  %480 = vmatprep.subr.mxu0 0.0
  %481 = vmatpush1.msra.mxu0 0.0
  %482 = vmatprep.subr.mxu0 0.0
  %483 = vmatpush1.msra.mxu0 0.0
  %484 = vmatprep.subr.mxu0 0.0
  %485 = vmatpush1.msra.mxu0 0.0
  %486 = vmatprep.subr.mxu0 0.0
  %487 = vmatpush1.msra.mxu0 0.0
  %488 = vmatprep.subr.mxu0 0.0
  %489 = vmatpush1.msra.mxu0 0.0
  %490 = vmatprep.subr.mxu0 0.0
  %491 = vmatpush1.msra.mxu0 0.0
  %492 = vmatprep.subr.mxu0 0.0
  %493 = vmatpush1.msra.mxu0 0.0
  %494 = vmatprep.mubr.f32.mxu0 0.0
  %495 = vmatmul.mubr.f32.gmra.mrb[0].mxu0 %v422
  %v496 = vpop.f32.mrb[0].mxu0
  %v497 = vadd.f32 %v414, %v496
  %v498 = vpop.f32.mrb[0].mxu0
  %499 = vmatprep.mubr.f32.mxu0 0.0
  %500 = vmatmul.mubr.f32.gmra.mrb[0].mxu0 %v425
  %v501 = vpop.f32.mrb[0].mxu0
  %v502 = vadd.f32 %v419, %v501
  %v503 = vpop.f32.mrb[0].mxu0
  %504 = vdwg.mxu0
  %505 = vst [vmem:[%s10] sm:$0xff] %v497
  %506 = vst [vmem:[%s10 + $0x8] sm:$0x3f] %v502
  // Predicated region
  $region42: #{ae_forward.1} parent=0 // pred_check
    _
  $region43: #{ae_forward.1} parent=0 // pred_check_branch
    %508 = sbr.rel (0) target = $region45
  $region44: #{ae_forward.1} parent=0 // pred_region
    _
  $region45: #{ae_forward.1} parent=0 // pred_fallthru
    _
  // Predicated region
  $region46: #{ae_forward.1} parent=0 // pred_check
    _
  $region47: #{ae_forward.1} parent=0 // pred_check_branch
    %510 = sbr.rel (0) target = $region49
  $region48: #{ae_forward.1} parent=0 // pred_region
    _
  $region49: #{ae_forward.1} parent=0 // pred_fallthru
    _

</llo_original>
